<compile_context>
chip_gen: v7x
topology: tpu7x:2x2x1
jax: 0.10.0
libtpu: 0.0.40
codegen_flags: <defaults>
</compile_context>

<pallas_src>
import math

import jax
import jax.numpy as jnp
from jax.experimental import pallas as pl
from jax.experimental.pallas import tpu as pltpu


def _groupwise_linear_kernel(x_ref, w_ref, b_ref, o_ref):
    # x_ref: (TILE_B, C, D)  w_ref: (1, C, D)  b_ref: (1, C)  o_ref: (TILE_B, C)
    x = x_ref[...].astype(jnp.float32)
    w = w_ref[...].astype(jnp.float32)          # broadcasts over the batch tile
    summed = jnp.sum(w * x, axis=-1)            # (TILE_B, C); lane reduce -> XLU
    o_ref[...] = (summed + b_ref[...].astype(jnp.float32)).astype(o_ref.dtype)


def groupwise_linear(x, W, b=None, *, vmem_budget_bytes=8 << 20):
    """x: (B, C, D), W: (1, C, D), b: (1, C) or None -> (B, C)."""
    B, C, D = x.shape
    if b is None:                                # bias=False path of the module
        b = jnp.zeros((1, C), dtype=x.dtype)

    itemsize = jnp.dtype(x.dtype).itemsize
    per_row = C * D * itemsize                   # bytes of x per batch row

    # Batch-tile size: a multiple of 8 (sublane rule for the (TILE_B, C) out
    # block), large enough to amortize the ~0.35us/step overhead and enable
    # pipelining, small enough that the double-buffered x stream (2 * tile)
    # plus the resident W fits the default scoped VMEM on every generation.
    tile_cap = max(8, (vmem_budget_bytes // max(per_row, 1)) // 8 * 8)
    b_pad8 = -(-B // 8) * 8                      # B rounded up to a multiple of 8
    tile_b = min(tile_cap, b_pad8)
    Bp = -(-B // tile_b) * tile_b                # padded batch (divisible by tile_b)

    if Bp != B:
        x = jnp.pad(x, ((0, Bp - B), (0, 0), (0, 0)))

    cost = pl.CostEstimate(
        flops=2 * Bp * C * D,
        transcendentals=0,
        bytes_accessed=(Bp * C * D + C * D) * itemsize + (Bp * C + C) * itemsize,
    )

    out = pl.pallas_call(
        _groupwise_linear_kernel,
        out_shape=jax.ShapeDtypeStruct((Bp, C), x.dtype),
        grid_spec=pltpu.PrefetchScalarGridSpec(
            num_scalar_prefetch=0,
            grid=(Bp // tile_b,),
            in_specs=[
                # x streams through in (tile_b, C, D) blocks along batch.
                pl.BlockSpec((tile_b, C, D), lambda i: (i, 0, 0)),
                # W / b: constant block index -> DMA'd once, stay resident.
                pl.BlockSpec((1, C, D), lambda i: (0, 0, 0)),
                pl.BlockSpec((1, C), lambda i: (0, 0)),
            ],
            out_specs=pl.BlockSpec((tile_b, C), lambda i: (i, 0)),
        ),
        compiler_params=pltpu.CompilerParams(
            # Batch tiles are independent -> shard across TensorCores (v7x).
            dimension_semantics=("parallel",),
        ),
        cost_estimate=cost,
    )(x, W, b)

    return out[:B] if Bp != B else out


def init_groupwise_linear_params(key, num_class, hidden_dim, dtype=jnp.float32):
    """Deterministic equivalent of GroupWiseLinear.reset_parameters()."""
    stdv = 1.0 / math.sqrt(hidden_dim)
    k_w, k_b = jax.random.split(key)
    W = jax.random.uniform(k_w, (1, num_class, hidden_dim),
                           minval=-stdv, maxval=stdv, dtype=dtype)
    b = jax.random.uniform(k_b, (1, num_class),
                           minval=-stdv, maxval=stdv, dtype=dtype)
    return W, b


if __name__ == "__main__":
    # Small demo shapes consistent with the module's forward:
    #   x: (batch, num_class, hidden_dim).
    # hidden_dim=128 keeps the reduction lane-dense; batch=4 exercises the
    # pad-to-tile path (padded to 8 rows, sliced back after the call).
    # NOTE: at sizes this tiny, plain XLA fusion would beat any pallas_call;
    # the kernel only pays off when B*C*D is large enough to saturate HBM.
    batch, num_class, hidden_dim = 4, 8, 128

    key = jax.random.PRNGKey(0)
    k_params, k_x = jax.random.split(key)

    W, b = init_groupwise_linear_params(k_params, num_class, hidden_dim)
    x = jax.random.normal(k_x, (batch, num_class, hidden_dim), dtype=jnp.float32)

    out = groupwise_linear(x, W, b)
    out = jax.block_until_ready(out)

    # Reference check against plain JAX (same semantics as the PyTorch forward).
    ref = jnp.sum(W * x, axis=-1) + b
    assert out.shape == (batch, num_class)
    assert jnp.allclose(out, ref, atol=1e-5, rtol=1e-5)

    print("KERNEL_OK")
</pallas_src>

<mosaic_0001>
module attributes {stable_mosaic.version = 11 : i64} {
  func.func @_groupwise_linear_kernel(%arg0: i32, %arg1: memref<8x8x128xf32, #tpu.memory_space<vmem>>, %arg2: memref<1x8x128xf32, #tpu.memory_space<vmem>>, %arg3: memref<1x8xf32, #tpu.memory_space<vmem>>, %arg4: memref<8x8xf32, #tpu.memory_space<vmem>>) attributes {dimension_semantics = [#tpu.dimension_semantics<parallel>], iteration_bounds = array<i64: 1>, scalar_prefetch = 0 : i64, scratch_operands = 0 : i64, tpu.core_type = #tpu.core_type<tc>, window_params = [{transform_indices = @transform_0, window_bounds = array<i64: 8, 8, 128>}, {pipeline_mode = #tpu.pipeline_mode<synchronous>, transform_indices = @transform_1, window_bounds = array<i64: 1, 8, 128>}, {pipeline_mode = #tpu.pipeline_mode<synchronous>, transform_indices = @transform_2, window_bounds = array<i64: 1, 8>}, {transform_indices = @transform_3, window_bounds = array<i64: 8, 8>}]} {
    %c0 = arith.constant 0 : index
    %c0_0 = arith.constant 0 : index
    %c0_1 = arith.constant 0 : index
    %0 = vector.load %arg1[%c0, %c0_0, %c0_1] : memref<8x8x128xf32, #tpu.memory_space<vmem>>, vector<8x8x128xf32>
    %c0_2 = arith.constant 0 : index
    %c0_3 = arith.constant 0 : index
    %c0_4 = arith.constant 0 : index
    %1 = vector.load %arg2[%c0_2, %c0_3, %c0_4] : memref<1x8x128xf32, #tpu.memory_space<vmem>>, vector<1x8x128xf32>
    %2 = vector.broadcast %1 : vector<1x8x128xf32> to vector<8x8x128xf32>
    %3 = arith.mulf %2, %0 : vector<8x8x128xf32>
    %cst = arith.constant dense<0.000000e+00> : vector<8x8xf32>
    %4 = vector.multi_reduction <add>, %3, %cst [2] : vector<8x8x128xf32> to vector<8x8xf32>
    %c0_5 = arith.constant 0 : index
    %c0_6 = arith.constant 0 : index
    %5 = vector.load %arg3[%c0_5, %c0_6] : memref<1x8xf32, #tpu.memory_space<vmem>>, vector<1x8xf32>
    %6 = vector.broadcast %5 : vector<1x8xf32> to vector<8x8xf32>
    %7 = arith.addf %4, %6 : vector<8x8xf32>
    %c0_7 = arith.constant 0 : index
    %c0_8 = arith.constant 0 : index
    %8 = vector.load %arg4[%c0_7, %c0_8] : memref<8x8xf32, #tpu.memory_space<vmem>>, vector<8x8xf32>
    tpu.vector_store %arg4[%c0_7, %c0_8], %7 {strides = array<i32>} : memref<8x8xf32, #tpu.memory_space<vmem>>, vector<8x8xf32>,
    return
  }
  func.func @transform_0(%arg0: i32) -> (i32, i32, i32) {
    %c0_i32 = arith.constant 0 : i32
    %c0_i32_0 = arith.constant 0 : i32
    %c0_i32_1 = arith.constant 0 : i32
    return %arg0, %c0_i32, %c0_i32_0 : i32, i32, i32
  }
  func.func @transform_1(%arg0: i32) -> (i32, i32, i32) {
    %c0_i32 = arith.constant 0 : i32
    %c0_i32_0 = arith.constant 0 : i32
    %c0_i32_1 = arith.constant 0 : i32
    %c0_i32_2 = arith.constant 0 : i32
    return %c0_i32, %c0_i32_0, %c0_i32_1 : i32, i32, i32
  }
  func.func @transform_2(%arg0: i32) -> (i32, i32) {
    %c0_i32 = arith.constant 0 : i32
    %c0_i32_0 = arith.constant 0 : i32
    %c0_i32_1 = arith.constant 0 : i32
    return %c0_i32, %c0_i32_0 : i32, i32
  }
  func.func @transform_3(%arg0: i32) -> (i32, i32) {
    %c0_i32 = arith.constant 0 : i32
    %c0_i32_0 = arith.constant 0 : i32
    return %arg0, %c0_i32 : i32, i32
  }
}

</mosaic_0001>

<llo_original>
// kernel: tpu_custom_call.1
$region0: #{tpu_custom_call.1}
  #allocation0 [shape = 'u32[]', space=smem, size = 0x4, offset = 0x4, fixed_abs, tag = 'smem constant byte address 0x4 - core index']
  #allocation1 [shape = 'u32[144,128]{1,0:T(1,128)}', space=vmem, size = 0x12000, scoped, tag = 'internal scratch']
  %s0 = inlined_call_operand.hbm [shape: f32[8,8,128], index: 0, kind: input, shape index: {}]
  %s1 = inlined_call_operand.hbm [shape: f32[1,8,128], index: 1, kind: input, shape index: {}]
  %s2 = inlined_call_operand.vmem [shape: f32[1,8], index: 2, kind: input, shape index: {}]
  %s3 = inlined_call_operand.hbm [shape: f32[8,8], index: 3, kind: output, shape index: {}]
  %s4 = sld [smem:[#allocation0]]
  $region30: #{tpu_custom_call.1} parent=0
    _
  %s6 = ssub.s32 1, %s4
  %s7 = scalar_select 0, %s6, %s4
  $region1: #{tpu_custom_call.1} parent=0
    #allocation2 [shape = 'u8[32768]{0}', space=vmem, size = 0x8000, scoped, tag = 'input window, operand 0, single buffered']
    #allocation3 [shape = 's32[1]{0}', space=sflag, size = 0x4, scoped, tag = 'scoped memory for tpu_custom_call.1']
    #allocation4 [shape = 's32[1]{0}', space=sflag, size = 0x4, scoped, tag = 'scoped memory for tpu_custom_call.1']
    #allocation5 [shape = 'u8[4096]{0}', space=vmem, size = 0x1000, scoped, tag = 'input window, operand 1, single buffered']
    #allocation6 [shape = 's32[1]{0}', space=sflag, size = 0x4, scoped, tag = 'scoped memory for tpu_custom_call.1']
    #allocation7 [shape = 'u8[4096]{0}', space=vmem, size = 0x1000, scoped, tag = 'output window, operand 0, single buffered']
    %8 = vsyncpa [#allocation3], 0
    %9 = vsyncpa [#allocation6], 0
    %10 = vsyncpa [#allocation4], 0
    // Predicated region
    $region2: #{tpu_custom_call.1} parent=1 // pred_check
      _
    $region3: #{tpu_custom_call.1} parent=1 // pred_check_branch
      %12 = sbr.rel (0) target = $region5
    $region4: #{tpu_custom_call.1} parent=1 // pred_region
      %s14 = ssub.s32 1024, 1024
      %15 = vsyncadd [#allocation3], %s14
      %s16 = sshll.u32 [#allocation2], 4
      %s17 = int_to_ptr.vmem [resolvable:$true] %s16
      %22 = dma.hbm_to_vmem [thread:$0]  %s0, 1024, %s17, [#allocation3], 128, 128, 8
    $region5: #{tpu_custom_call.1} parent=1 // pred_fallthru
      _
    // Predicated region
    $region6: #{tpu_custom_call.1} parent=1 // pred_check
      _
    $region7: #{tpu_custom_call.1} parent=1 // pred_check_branch
      %24 = sbr.rel (0) target = $region9
    $region8: #{tpu_custom_call.1} parent=1 // pred_region
      %s26 = ssub.s32 128, 128
      %27 = vsyncadd [#allocation6], %s26
      %s29 = sshll.u32 [#allocation5], 4
      %s30 = int_to_ptr.vmem [resolvable:$true] %s29
      %32 = dma.hbm_to_vmem [thread:$0]  %s1, 128, %s30, [#allocation6]
    $region9: #{tpu_custom_call.1} parent=1 // pred_fallthru
      _
    // Predicated region
    $region10: #{tpu_custom_call.1} parent=1 // pred_check
      _
    $region11: #{tpu_custom_call.1} parent=1 // pred_check_branch
      %34 = sbr.rel (0) target = $region13
    $region12: #{tpu_custom_call.1} parent=1 // pred_region
      _
    $region13: #{tpu_custom_call.1} parent=1 // pred_fallthru
      _
    // Predicated region
    $region14: #{tpu_custom_call.1} parent=1 // pred_check
      _
    $region15: #{tpu_custom_call.1} parent=1 // pred_check_branch
      %36 = sbr.rel (0) target = $region17
    $region16: #{tpu_custom_call.1} parent=1 // pred_region
      %37 = dma.done [#allocation3], 1024
    $region17: #{tpu_custom_call.1} parent=1 // pred_fallthru
      _
    // Predicated region
    $region18: #{tpu_custom_call.1} parent=1 // pred_check
      _
    $region19: #{tpu_custom_call.1} parent=1 // pred_check_branch
      %39 = sbr.rel (0) target = $region21
    $region20: #{tpu_custom_call.1} parent=1 // pred_region
      %40 = dma.done [#allocation6], 128
    $region21: #{tpu_custom_call.1} parent=1 // pred_fallthru
      _
    %v41 = vld [vmem:[#allocation2] sm:$0xff]
    %v42 = vld [vmem:[#allocation2 + $0x8] sm:$0xff]
    %v43 = vld [vmem:[#allocation2 + $0x10] sm:$0xff]
    %v44 = vld [vmem:[#allocation2 + $0x18] sm:$0xff]
    %v45 = vld [vmem:[#allocation2 + $0x20] sm:$0xff]
    %v46 = vld [vmem:[#allocation2 + $0x28] sm:$0xff]
    %v47 = vld [vmem:[#allocation2 + $0x30] sm:$0xff]
    %v48 = vld [vmem:[#allocation2 + $0x38] sm:$0xff]
    %v49 = vld [vmem:[#allocation5] sm:$0xff]
    %v50 = vmul.f32 %v49, %v41
    %v51 = vmul.f32 %v49, %v42
    %v52 = vmul.f32 %v49, %v43
    %v53 = vmul.f32 %v49, %v44
    %v54 = vmul.f32 %v49, %v45
    %v55 = vmul.f32 %v49, %v46
    %v56 = vmul.f32 %v49, %v47
    %v57 = vmul.f32 %v49, %v48
    %58 = vadd.xlane.f32.xlu0 %v50
    %v59 = vpop.xlane.xlu0 %58
    %60 = vadd.xlane.f32.xlu0 %v51
    %v61 = vpop.xlane.xlu0 %60
    %62 = vadd.xlane.f32.xlu0 %v52
    %v63 = vpop.xlane.xlu0 %62
    %64 = vadd.xlane.f32.xlu0 %v53
    %v65 = vpop.xlane.xlu0 %64
    %66 = vadd.xlane.f32.xlu0 %v54
    %v67 = vpop.xlane.xlu0 %66
    %68 = vadd.xlane.f32.xlu0 %v55
    %v69 = vpop.xlane.xlu0 %68
    %70 = vadd.xlane.f32.xlu0 %v56
    %v71 = vpop.xlane.xlu0 %70
    %72 = vadd.xlane.f32.xlu0 %v57
    %v73 = vpop.xlane.xlu0 %72
    %v74 = vld [vmem:[%s2] sm:$0x1]
    %v76 = vlaneseq
    %v77 = vshrl.u32 %v76, 7
    %v78 = vsub.s32 0, %v77
    %v79 = vrot.slane %v74, %v78
    %81 = vbcast.lane.b32.xlu0 %v79, 256
    %v82 = vpop.permute.xlu0 %81
    %v84 = vadd.f32 %v59, %v82
    %v85 = vadd.f32 %v61, %v82
    %v86 = vadd.f32 %v63, %v82
    %v87 = vadd.f32 %v65, %v82
    %v88 = vadd.f32 %v67, %v82
    %v89 = vadd.f32 %v69, %v82
    %v90 = vadd.f32 %v71, %v82
    %v91 = vadd.f32 %v73, %v82
    %100 = vset.pattern.permute.xlu0 0
    %101 = vperm.xlu0 %100, %v84
    %v102 = vpop.permute.xlu0 %101
    %103 = vset.pattern.permute.xlu0 0
    %104 = vperm.xlu0 %103, %v85
    %v105 = vpop.permute.xlu0 %104
    %106 = vset.pattern.permute.xlu0 0
    %107 = vperm.xlu0 %106, %v86
    %v108 = vpop.permute.xlu0 %107
    %109 = vset.pattern.permute.xlu0 0
    %110 = vperm.xlu0 %109, %v87
    %v111 = vpop.permute.xlu0 %110
    %112 = vset.pattern.permute.xlu0 0
    %113 = vperm.xlu0 %112, %v88
    %v114 = vpop.permute.xlu0 %113
    %115 = vset.pattern.permute.xlu0 0
    %116 = vperm.xlu0 %115, %v89
    %v117 = vpop.permute.xlu0 %116
    %118 = vset.pattern.permute.xlu0 0
    %119 = vperm.xlu0 %118, %v90
    %v120 = vpop.permute.xlu0 %119
    %121 = vset.pattern.permute.xlu0 0
    %122 = vperm.xlu0 %121, %v91
    %v123 = vpop.permute.xlu0 %122
    %v124 = vlaneseq
    %v125 = vand.u32 %v124, 127
    %v126 = vlaneseq
    %v127 = vshrl.u32 %v126, 7
    %v128 = vsub.s32 %v125, %v127
    %v129 = vrot.slane %v102, %v128
    %v130 = vlaneseq
    %v131 = vshrl.u32 %v130, 7
    %v132 = vsub.s32 %v125, %v131
    %v133 = vrot.slane %v105, %v132
    %v134 = vlaneseq
    %v135 = vshrl.u32 %v134, 7
    %v136 = vsub.s32 %v125, %v135
    %v137 = vrot.slane %v108, %v136
    %v138 = vlaneseq
    %v139 = vshrl.u32 %v138, 7
    %v140 = vsub.s32 %v125, %v139
    %v141 = vrot.slane %v111, %v140
    %v142 = vlaneseq
    %v143 = vshrl.u32 %v142, 7
    %v144 = vsub.s32 %v125, %v143
    %v145 = vrot.slane %v114, %v144
    %v146 = vlaneseq
    %v147 = vshrl.u32 %v146, 7
    %v148 = vsub.s32 %v125, %v147
    %v149 = vrot.slane %v117, %v148
    %v150 = vlaneseq
    %v151 = vshrl.u32 %v150, 7
    %v152 = vsub.s32 %v125, %v151
    %v153 = vrot.slane %v120, %v152
    %v154 = vlaneseq
    %v155 = vshrl.u32 %v154, 7
    %v156 = vsub.s32 %v125, %v155
    %v157 = vrot.slane %v123, %v156
    %vm158 = vcmask 1041409
    %v159 = vsel %vm158, %v133, %v129
    %vm160 = vcmask 1042434
    %v161 = vsel %vm160, %v137, %v159
    %vm162 = vcmask 1043459
    %v163 = vsel %vm162, %v141, %v161
    %vm164 = vcmask 1044484
    %v165 = vsel %vm164, %v145, %v163
    %vm166 = vcmask 1045509
    %v167 = vsel %vm166, %v149, %v165
    %vm168 = vcmask 1046534
    %v169 = vsel %vm168, %v153, %v167
    %vm170 = vcmask 1047559
    %v171 = vsel %vm170, %v157, %v169
    %vm173 = vcmask 64512
    %174 = vst.msk [vmem:[#allocation7] sm:$0xff] %vm173, %v171
    // Predicated region
    $region22: #{tpu_custom_call.1} parent=1 // pred_check
      _
    $region23: #{tpu_custom_call.1} parent=1 // pred_check_branch
      %176 = sbr.rel (0) target = $region25
    $region24: #{tpu_custom_call.1} parent=1 // pred_region
      %s178 = ssub.s32 128, 128
      %179 = vsyncadd [#allocation4], %s178
      %s181 = sshll.u32 [#allocation7], 4
      %s182 = int_to_ptr.vmem [resolvable:$true] %s181
      %184 = dma.vmem_to_hbm [thread:$0]  %s182, 128, %s3, [#allocation4]
    $region25: #{tpu_custom_call.1} parent=1 // pred_fallthru
      _
    // Predicated region
    $region26: #{tpu_custom_call.1} parent=1 // pred_check
      _
    $region27: #{tpu_custom_call.1} parent=1 // pred_check_branch
      %186 = sbr.rel (0) target = $region29
    $region28: #{tpu_custom_call.1} parent=1 // pred_region
      %187 = dma.done [#allocation4], 128
    $region29: #{tpu_custom_call.1} parent=1 // pred_fallthru
      _
    %188 = vsyncpa [#allocation3], 1
    %189 = vsyncpa [#allocation6], 1
    %190 = vsyncpa [#allocation4], 1

</llo_original>
